<compile_context>
chip_gen: v5e
topology: v5e:2x2
jax: 0.10.0
libtpu: 0.0.40
codegen_flags: <defaults>
</compile_context>

<pallas_src>
import functools

import jax
import jax.numpy as jnp
import numpy as np
from jax import lax
from jax.experimental import pallas as pl
from jax.experimental.pallas import tpu as pltpu


def attention_kernel(x_ref, w_attn_ref, w_ctx_ref, ctx_ref, attn_ref, *, compute_dtype):
    # x_ref:      (BB, T, D) block of lstm_output
    # w_attn_ref: (D, D)  attention_weights.weight, PyTorch (out, in) layout (resident)
    # w_ctx_ref:  (1, D)  context_vector.weight,    PyTorch (out, in) layout (resident)
    # ctx_ref:    (BB, D) context rows for this batch block
    # attn_ref:   (BB, T) attention-weight rows for this batch block
    BB, T, D = x_ref.shape
    x = x_ref[...]                                   # (BB, T, D) f32

    # ---- s = tanh(x @ W_attn^T) ------------------------------------------------
    # Flatten batch*seq into the MXU M rows (one big matmul per step), contract x's
    # feature axis against W_attn's "in" axis directly (no transpose), bf16 inputs
    # on the production path with f32 accumulation.
    xm = x.reshape(BB * T, D).astype(compute_dtype)  # (BB*T, D)
    s = jnp.tanh(
        lax.dot_general(
            xm, w_attn_ref[...].astype(compute_dtype),
            dimension_numbers=(((1,), (1,)), ((), ())),
            preferred_element_type=jnp.float32,
        )
    ).reshape(BB, T, D)                              # (BB, T, D) f32

    # ---- logits = s @ W_ctx^T (output width 1) ----------------------------------
    # N=1 MXU matmul would be ~all padding; do a VPU multiply + lane reduce straight
    # into a (BB, T) slab (no (BB*T,1)->(BB,T) relayout, lane-dense writeback shape).
    w_ctx = w_ctx_ref[...].astype(jnp.float32)       # (1, D)
    logits = jnp.sum(s * w_ctx[None, :, :], axis=-1)  # (BB, T) f32

    # ---- softmax over the sequence axis (per row) --------------------------------
    m = jnp.max(logits, axis=-1, keepdims=True)      # (BB, 1)
    e = jnp.exp(logits - m)                          # (BB, T)
    denom = jnp.sum(e, axis=-1, keepdims=True)       # (BB, 1)
    # approx=False keeps the exact-path 1e-5 check; flip to approx=True (EUP vrcp)
    # once tolerances are bf16-level anyway.
    attn = e * pl.reciprocal(denom, approx=False)    # (BB, T)

    # ---- context = attn @ x  (torch.bmm semantics) -------------------------------
    # Batched MXU matmul ('bqt,btd->bqd', q=1) instead of a sublane reduce so the
    # MXU stays the binding unit at production T/D; accumulation in f32.
    ctx = jnp.einsum(
        "bqt,btd->bqd", attn[:, None, :], x,
        preferred_element_type=jnp.float32,
    ).reshape(BB, D)                                 # (BB, D) f32

    ctx_ref[...] = ctx.astype(ctx_ref.dtype)
    attn_ref[...] = attn.astype(attn_ref.dtype)


def _pick_block_b(B, T, target_rows=256):
    """Batch elements per grid step.

    Aim for >= target_rows MXU M-rows (BB*T) per step (256 fills the v6e/v7x
    2x256x256 MXU; pass target_rows=128 on v5e), while keeping the grid exact and
    the output blocks' sublane dim a multiple of 8 (or the full batch)."""
    if B * T <= target_rows:
        return B                      # toy / small shapes: one fat program
    bb = max(8, ((target_rows + T - 1) // T) // 8 * 8)
    while bb >= 8:
        if B % bb == 0:
            return bb
        bb -= 8
    return B


def attention_forward(lstm_output, w_attn, w_ctx, *, compute_dtype=jnp.bfloat16,
                      block_b=None):
    B, T, D = lstm_output.shape
    if block_b is None:
        block_b = _pick_block_b(B, T)
    assert B % block_b == 0
    grid = (B // block_b,)

    out_shapes = (
        jax.ShapeDtypeStruct((B, D), lstm_output.dtype),   # context
        jax.ShapeDtypeStruct((B, T), lstm_output.dtype),    # attention weights
    )
    grid_spec = pltpu.PrefetchScalarGridSpec(
        num_scalar_prefetch=0,
        grid=grid,
        in_specs=[
            pl.BlockSpec((block_b, T, D), lambda b: (b, 0, 0)),  # x block
            pl.BlockSpec((D, D), lambda b: (0, 0)),              # W_attn (resident)
            pl.BlockSpec((1, D), lambda b: (0, 0)),              # W_ctx  (resident)
        ],
        out_specs=(
            pl.BlockSpec((block_b, D), lambda b: (b, 0)),        # context slab
            pl.BlockSpec((block_b, T), lambda b: (b, 0)),        # attention slab
        ),
    )
    kernel = functools.partial(attention_kernel, compute_dtype=compute_dtype)
    return pl.pallas_call(
        kernel,
        out_shape=out_shapes,
        grid_spec=grid_spec,
        compiler_params=pltpu.CompilerParams(
            dimension_semantics=("parallel",)),
    )(lstm_output, w_attn, w_ctx)


def attention_reference(lstm_output, w_attn, w_ctx):
    # Pure-JAX reference mirroring the PyTorch module exactly (f32 end to end).
    s = jnp.tanh(jnp.einsum("btd,ed->bte", lstm_output, w_attn))
    logits = jnp.einsum("bte,oe->bto", s, w_ctx)[..., 0]
    attn = jax.nn.softmax(logits, axis=-1)
    ctx = jnp.einsum("bt,btd->bd", attn, lstm_output)
    return ctx, attn


if __name__ == "__main__":
    hidden_size = 16
    D = hidden_size * 2          # 32
    B, T = 2, 8

    key = jax.random.PRNGKey(0)
    k_x, k_w, k_v = jax.random.split(key, 3)

    # Deterministic synthetic parameters (PyTorch Linear-style uniform init).
    bound = 1.0 / np.sqrt(D)
    lstm_output = jax.random.normal(k_x, (B, T, D), dtype=jnp.float32)
    w_attn = jax.random.uniform(k_w, (D, D), minval=-bound, maxval=bound,
                                dtype=jnp.float32)
    w_ctx = jax.random.uniform(k_v, (1, D), minval=-bound, maxval=bound,
                               dtype=jnp.float32)

    ctx_gold, attn_gold = attention_reference(lstm_output, w_attn, w_ctx)

    # Exact path: f32 MXU inputs, tight tolerance against the PyTorch-equivalent ref.
    ctx_f32, attn_f32 = attention_forward(lstm_output, w_attn, w_ctx,
                                          compute_dtype=jnp.float32)
    jax.block_until_ready((ctx_f32, attn_f32))
    np.testing.assert_allclose(np.asarray(ctx_f32), np.asarray(ctx_gold),
                               rtol=1e-5, atol=1e-5)
    np.testing.assert_allclose(np.asarray(attn_f32), np.asarray(attn_gold),
                               rtol=1e-5, atol=1e-5)

    # Production path: bf16 MXU inputs with f32 accumulation -> bf16-level tolerance.
    ctx_bf16, attn_bf16 = attention_forward(lstm_output, w_attn, w_ctx,
                                            compute_dtype=jnp.bfloat16)
    jax.block_until_ready((ctx_bf16, attn_bf16))
    np.testing.assert_allclose(np.asarray(ctx_bf16), np.asarray(ctx_gold),
                               rtol=2e-2, atol=2e-2)
    np.testing.assert_allclose(np.asarray(attn_bf16), np.asarray(attn_gold),
                               rtol=2e-2, atol=2e-2)

    print("KERNEL_OK")
</pallas_src>

<mosaic_0001>
module attributes {stable_mosaic.version = 11 : i64} {
  func.func @attention_kernel(%arg0: i32, %arg1: memref<2x8x32xf32, #tpu.memory_space<vmem>>, %arg2: memref<32x32xf32, #tpu.memory_space<vmem>>, %arg3: memref<1x32xf32, #tpu.memory_space<vmem>>, %arg4: memref<2x32xf32, #tpu.memory_space<vmem>>, %arg5: memref<2x8xf32, #tpu.memory_space<vmem>>) attributes {dimension_semantics = [#tpu.dimension_semantics<parallel>], iteration_bounds = array<i64: 1>, scalar_prefetch = 0 : i64, scratch_operands = 0 : i64, tpu.core_type = #tpu.core_type<tc>, window_params = [{transform_indices = @transform_0, window_bounds = array<i64: 2, 8, 32>}, {pipeline_mode = #tpu.pipeline_mode<synchronous>, transform_indices = @transform_1, window_bounds = array<i64: 32, 32>}, {pipeline_mode = #tpu.pipeline_mode<synchronous>, transform_indices = @transform_2, window_bounds = array<i64: 1, 32>}, {transform_indices = @transform_3, window_bounds = array<i64: 2, 32>}, {transform_indices = @transform_4, window_bounds = array<i64: 2, 8>}]} {
    %c0 = arith.constant 0 : index
    %c0_0 = arith.constant 0 : index
    %c0_1 = arith.constant 0 : index
    %0 = vector.load %arg1[%c0, %c0_0, %c0_1] : memref<2x8x32xf32, #tpu.memory_space<vmem>>, vector<2x8x32xf32>
    %1 = vector.shape_cast %0 : vector<2x8x32xf32> to vector<16x32xf32>
    %c0_2 = arith.constant 0 : index
    %c0_3 = arith.constant 0 : index
    %2 = vector.load %arg2[%c0_2, %c0_3] : memref<32x32xf32, #tpu.memory_space<vmem>>, vector<32x32xf32>
    %cst = arith.constant dense<0.000000e+00> : vector<16x32xf32>
    %3 = tpu.matmul %1, %2, %cst {dimension_numbers = #tpu.dot_dimension_numbers<[1], [1], [0], [0], [0, 0, 1, 0], [], []>} : vector<16x32xf32>, vector<32x32xf32>, vector<16x32xf32> -> vector<16x32xf32>
    %4 = math.tanh %3 : vector<16x32xf32>
    %5 = vector.shape_cast %4 : vector<16x32xf32> to vector<2x8x32xf32>
    %c0_4 = arith.constant 0 : index
    %c0_5 = arith.constant 0 : index
    %6 = vector.load %arg3[%c0_4, %c0_5] : memref<1x32xf32, #tpu.memory_space<vmem>>, vector<1x32xf32>
    %7 = vector.shape_cast %6 : vector<1x32xf32> to vector<1x1x32xf32>
    %8 = vector.broadcast %7 : vector<1x1x32xf32> to vector<2x8x32xf32>
    %9 = arith.mulf %5, %8 : vector<2x8x32xf32>
    %cst_6 = arith.constant dense<0.000000e+00> : vector<2x8xf32>
    %10 = vector.multi_reduction <add>, %9, %cst_6 [2] : vector<2x8x32xf32> to vector<2x8xf32>
    %cst_7 = arith.constant dense<0xFF800000> : vector<2xf32>
    %11 = vector.multi_reduction <maximumf>, %10, %cst_7 [1] : vector<2x8xf32> to vector<2xf32>
    %12 = vector.shape_cast %11 : vector<2xf32> to vector<2x1xf32>
    %13 = vector.broadcast %12 : vector<2x1xf32> to vector<2x8xf32>
    %14 = arith.subf %10, %13 : vector<2x8xf32>
    %15 = math.exp %14 : vector<2x8xf32>
    %cst_8 = arith.constant dense<0.000000e+00> : vector<2xf32>
    %16 = vector.multi_reduction <add>, %15, %cst_8 [1] : vector<2x8xf32> to vector<2xf32>
    %17 = vector.shape_cast %16 : vector<2xf32> to vector<2x1xf32>
    %18 = tpu.reciprocal %17 : vector<2x1xf32> -> vector<2x1xf32>
    %19 = vector.broadcast %18 : vector<2x1xf32> to vector<2x8xf32>
    %20 = arith.mulf %15, %19 : vector<2x8xf32>
    %21 = vector.shape_cast %20 : vector<2x8xf32> to vector<2x1x8xf32>
    "tpu.trace_start"() <{level = 10 : i32, message = "bqt,btd->bqd"}> : () -> ()
    %cst_9 = arith.constant dense<0.000000e+00> : vector<2x1x32xf32>
    %22 = tpu.matmul %21, %0, %cst_9 {dimension_numbers = #tpu.dot_dimension_numbers<[2], [1], [1], [2], [0, 0, 0, 1, 1, 2], [0], [0]>} : vector<2x1x8xf32>, vector<2x8x32xf32>, vector<2x1x32xf32> -> vector<2x1x32xf32>
    "tpu.trace_stop"() : () -> ()
    %23 = vector.shape_cast %22 : vector<2x1x32xf32> to vector<2x32xf32>
    %c0_10 = arith.constant 0 : index
    %c0_11 = arith.constant 0 : index
    %24 = vector.load %arg4[%c0_10, %c0_11] : memref<2x32xf32, #tpu.memory_space<vmem>>, vector<2x32xf32>
    tpu.vector_store %arg4[%c0_10, %c0_11], %23 {strides = array<i32>} : memref<2x32xf32, #tpu.memory_space<vmem>>, vector<2x32xf32>,
    %c0_12 = arith.constant 0 : index
    %c0_13 = arith.constant 0 : index
    %25 = vector.load %arg5[%c0_12, %c0_13] : memref<2x8xf32, #tpu.memory_space<vmem>>, vector<2x8xf32>
    tpu.vector_store %arg5[%c0_12, %c0_13], %20 {strides = array<i32>} : memref<2x8xf32, #tpu.memory_space<vmem>>, vector<2x8xf32>,
    return
  }
  func.func @transform_0(%arg0: i32) -> (i32, i32, i32) {
    %c0_i32 = arith.constant 0 : i32
    %c0_i32_0 = arith.constant 0 : i32
    %c0_i32_1 = arith.constant 0 : i32
    return %arg0, %c0_i32, %c0_i32_0 : i32, i32, i32
  }
  func.func @transform_1(%arg0: i32) -> (i32, i32) {
    %c0_i32 = arith.constant 0 : i32
    %c0_i32_0 = arith.constant 0 : i32
    %c0_i32_1 = arith.constant 0 : i32
    return %c0_i32, %c0_i32_0 : i32, i32
  }
  func.func @transform_2(%arg0: i32) -> (i32, i32) {
    %c0_i32 = arith.constant 0 : i32
    %c0_i32_0 = arith.constant 0 : i32
    %c0_i32_1 = arith.constant 0 : i32
    return %c0_i32, %c0_i32_0 : i32, i32
  }
  func.func @transform_3(%arg0: i32) -> (i32, i32) {
    %c0_i32 = arith.constant 0 : i32
    %c0_i32_0 = arith.constant 0 : i32
    return %arg0, %c0_i32 : i32, i32
  }
  func.func @transform_4(%arg0: i32) -> (i32, i32) {
    %c0_i32 = arith.constant 0 : i32
    %c0_i32_0 = arith.constant 0 : i32
    return %arg0, %c0_i32 : i32, i32
  }
}

</mosaic_0001>

<llo_original>
// kernel: tpu_custom_call.1
$region0: #{tpu_custom_call.1}
  #allocation0 [shape = 'u32[]', space=smem, size = 0x4, offset = 0x4, fixed_abs, tag = 'smem constant byte address 0x4 - core index']
  #allocation1 [shape = 'u32[72,128]{1,0:T(1,128)}', space=vmem, size = 0x9000, scoped, tag = 'internal scratch']
  %s0 = inlined_call_operand.hbm [shape: f32[2,8,32], index: 0, kind: input, shape index: {}]
  %s1 = inlined_call_operand.hbm [shape: f32[32,32], index: 1, kind: input, shape index: {}]
  %s2 = inlined_call_operand.vmem [shape: f32[1,32], index: 2, kind: input, shape index: {}]
  %s3 = inlined_call_operand.hbm [shape: f32[2,32], index: 3, kind: output, shape index: {0}]
  %s4 = inlined_call_operand.hbm [shape: f32[2,8], index: 4, kind: output, shape index: {1}]
  %5 = xla_tuple %s3, %s4
  %s6 = sld [smem:[#allocation0]]
  $region38: #{tpu_custom_call.1} parent=0
    _
  %s8 = ssub.s32 1, %s6
  %s9 = scalar_select 0, %s8, %s6
  $region1: #{tpu_custom_call.1} parent=0
    #allocation2 [shape = 'u8[8192]{0}', space=vmem, size = 0x2000, scoped, tag = 'input window, operand 0, single buffered']
    #allocation3 [shape = 's32[1]{0}', space=sflag, size = 0x4, scoped, tag = 'scoped memory for tpu_custom_call.1']
    #allocation4 [shape = 's32[1]{0}', space=sflag, size = 0x4, scoped, tag = 'scoped memory for tpu_custom_call.1']
    #allocation5 [shape = 'u8[16384]{0}', space=vmem, size = 0x4000, scoped, tag = 'input window, operand 1, single buffered']
    #allocation6 [shape = 's32[1]{0}', space=sflag, size = 0x4, scoped, tag = 'scoped memory for tpu_custom_call.1']
    #allocation7 [shape = 'u8[1024]{0}', space=vmem, size = 0x400, scoped, tag = 'output window, operand 0, single buffered']
    #allocation8 [shape = 'u8[1024]{0}', space=vmem, size = 0x400, scoped, tag = 'output window, operand 1, single buffered']
    #allocation9 [shape = 's32[1]{0}', space=sflag, size = 0x4, scoped, tag = 'scoped memory for tpu_custom_call.1']
    %10 = vsyncpa [#allocation3], 0
    %11 = vsyncpa [#allocation6], 0
    %12 = vsyncpa [#allocation4], 0
    %13 = vsyncpa [#allocation9], 0
    // Predicated region
    $region2: #{tpu_custom_call.1} parent=1 // pred_check
      _
    $region3: #{tpu_custom_call.1} parent=1 // pred_check_branch
      %15 = sbr.rel (0) target = $region5
    $region4: #{tpu_custom_call.1} parent=1 // pred_region
      %17 = vsyncadd [#allocation3], 0
      %s18 = sshll.u32 %s0, 4
      %s19 = int_to_ptr.hbm [resolvable:$true] %s18
      %s20 = sshll.u32 [#allocation2], 4
      %s21 = int_to_ptr.vmem [resolvable:$true] %s20
      %26 = dma.hbm_to_vmem [thread:$0]  %s19, 256, %s21, [#allocation3], 128, 128, 8
    $region5: #{tpu_custom_call.1} parent=1 // pred_fallthru
      _
    // Predicated region
    $region6: #{tpu_custom_call.1} parent=1 // pred_check
      _
    $region7: #{tpu_custom_call.1} parent=1 // pred_check_branch
      %28 = sbr.rel (0) target = $region9
    $region8: #{tpu_custom_call.1} parent=1 // pred_region
      %30 = vsyncadd [#allocation6], 0
      %s31 = sshll.u32 %s1, 4
      %s32 = int_to_ptr.hbm [resolvable:$true] %s31
      %s33 = sshll.u32 [#allocation5], 4
      %s34 = int_to_ptr.vmem [resolvable:$true] %s33
      %39 = dma.hbm_to_vmem [thread:$0]  %s32, 512, %s34, [#allocation6], 128, 128, 8
    $region9: #{tpu_custom_call.1} parent=1 // pred_fallthru
      _
    // Predicated region
    $region10: #{tpu_custom_call.1} parent=1 // pred_check
      _
    $region11: #{tpu_custom_call.1} parent=1 // pred_check_branch
      %41 = sbr.rel (0) target = $region13
    $region12: #{tpu_custom_call.1} parent=1 // pred_region
      _
    $region13: #{tpu_custom_call.1} parent=1 // pred_fallthru
      _
    // Predicated region
    $region14: #{tpu_custom_call.1} parent=1 // pred_check
      _
    $region15: #{tpu_custom_call.1} parent=1 // pred_check_branch
      %43 = sbr.rel (0) target = $region17
    $region16: #{tpu_custom_call.1} parent=1 // pred_region
      %45 = dma.done [#allocation3], 256
    $region17: #{tpu_custom_call.1} parent=1 // pred_fallthru
      _
    // Predicated region
    $region18: #{tpu_custom_call.1} parent=1 // pred_check
      _
    $region19: #{tpu_custom_call.1} parent=1 // pred_check_branch
      %47 = sbr.rel (0) target = $region21
    $region20: #{tpu_custom_call.1} parent=1 // pred_region
      %49 = dma.done [#allocation6], 512
    $region21: #{tpu_custom_call.1} parent=1 // pred_fallthru
      _
    %v50 = vld [vmem:[#allocation2] sm:$0xff]
    %v51 = vld [vmem:[#allocation2 + $0x8] sm:$0xff]
    %v52 = vld [vmem:[#allocation5] sm:$0xff]
    %v53 = vld [vmem:[#allocation5 + $0x8] sm:$0xff]
    %v54 = vld [vmem:[#allocation5 + $0x10] sm:$0xff]
    %v55 = vld [vmem:[#allocation5 + $0x18] sm:$0xff]
    %vm56 = vcmask 261120
    %v58 = vsel %vm56, %v50, 0
    %v61 = vsel %vm56, %v51, 0
    %v64 = vsel %vm56, %v52, 0
    %v67 = vsel %vm56, %v53, 0
    %v70 = vsel %vm56, %v54, 0
    %v73 = vsel %vm56, %v55, 0
    %75 = vmatpush.xpose.msra.mxu0 0.0
    %76 = vmatpush.xpose.msra.mxu0 0.0
    %77 = vmatpush.xpose.msra.mxu0 0.0
    %78 = vmatpush.xpose.msra.mxu0 0.0
    %79 = vmatpush.xpose.msra.mxu0 0.0
    %80 = vmatpush.xpose.msra.mxu0 0.0
    %81 = vmatpush.xpose.msra.mxu0 0.0
    %82 = vmatpush.xpose.msra.mxu0 0.0
    %83 = vmatpush.xpose.msra.mxu0 0.0
    %84 = vmatpush.xpose.msra.mxu0 0.0
    %85 = vmatpush.xpose.msra.mxu0 0.0
    %86 = vmatpush.xpose.msra.mxu0 0.0
    %87 = vmatpush.xpose.msra.mxu0 %v73
    %88 = vmatpush.xpose.msra.mxu0 %v70
    %89 = vmatpush.xpose.msra.mxu0 %v67
    %90 = vmatpush.xpose.msra.mxu0 %v64
    %91 = vmatmul.f32.gmra.mxu0 %v58
    %v92 = vpop.f32.mrf.mxu0
    %v93 = vadd.f32 0.0, %v92
    %94 = vmatmul.f32.gmra.mxu0 %v61
    %v95 = vpop.f32.mrf.mxu0
    %v96 = vadd.f32 0.0, %v95
    %97 = vdwg.mxu0
    %v98 = vtanh.pop %v93
    %v99 = vtanh.pop %v96
    %v100 = vld [vmem:[%s2] sm:$0x1]
    %v102 = vperm.slane %v100, 0
    %v104 = vmul.f32 %v98, %v102
    %v105 = vmul.f32 %v99, %v102
    %v106 = vsel %vm56, %v104, 0.0
    %107 = vadd.xlane.f32.xlu0 %v106
    %v108 = vpop.xlane.xlu0 %107
    %v109 = vsel %vm56, %v105, 0.0
    %110 = vadd.xlane.f32.xlu0 %v109
    %v111 = vpop.xlane.xlu0 %110
    %v114 = vlaneseq
    %v115 = vand.u32 %v114, 127
    %v116 = vperm.slane %v108, %v115
    %v117 = vperm.slane %v111, %v115
    %vm118 = vcmask 1041409
    %v119 = vsel %vm118, %v117, %v116
    %vm121 = vcmask 58368
    %v122 = vsel %vm121, %v119, -inf
    %123 = vmax.xlane.f32.xlu0 %v122
    %v124 = vpop.xlane.xlu0 %123
    %v126 = vperm.slane %v124, 0
    %v127 = vperm.slane %v124, 1
    %v130 = vsub.f32 %v108, %v126
    %v131 = vsub.f32 %v111, %v127
    %v132 = vmul.f32 %v130, 1.442695
    %v133 = vpow.pop %v132
    %v134 = vmul.f32 %v131, 1.442695
    %v135 = vpow.pop %v134
    %138 = vset.pattern.permute.xlu0 0
    %139 = vperm.xlu0 %138, %v133
    %v140 = vpop.permute.xlu0 %139
    %141 = vset.pattern.permute.xlu0 0
    %142 = vperm.xlu0 %141, %v135
    %v143 = vpop.permute.xlu0 %142
    %v144 = vperm.slane %v140, %v115
    %v145 = vperm.slane %v143, %v115
    %v146 = vsel %vm118, %v145, %v144
    %v148 = vsel %vm121, %v146, 0.0
    %149 = vadd.xlane.f32.xlu0 %v148
    %v150 = vpop.xlane.xlu0 %149
    %v151 = vrcp.pop %v150
    %v152 = vmul.f32 %v150, %v151
    %v153 = vsub.f32 1.0, %v152
    %v154 = vmul.f32 %v151, %v153
    %v155 = vadd.f32 %v151, %v154
    %vm156 = vweird.f32 %v150
    %vm157 = vweird.f32 %v151
    %vm158 = vmor %vm156, %vm157
    %v159 = vsel %vm158, %v151, %v155
    %v160 = vand.u32 2147483647, %v150
    %vm161 = vcmp.eq.f32.partialorder %v160, 8.507059e+37
    %v162 = vand.u32 %v150, 2147483648
    %v163 = vor.u32 1.1754944e-38, %v162
    %v164 = vsel %vm161, %v163, %v159
    %v166 = vperm.slane %v164, 0
    %v167 = vperm.slane %v164, 1
    %v170 = vmul.f32 %v133, %v166
    %v171 = vmul.f32 %v135, %v167
    %173 = vset.pattern.permute.xlu0 0
    %174 = vperm.xlu0 %173, %v170
    %v175 = vpop.permute.xlu0 %174
    %v176 = vperm.slane %v175, %v115
    %vm177 = vcmask 64512
    %v178 = vsel %vm177, %v176, 0
    %180 = vmatpush.msra.mxu0 0.0
    %181 = vmatpush.msra.mxu0 0.0
    %182 = vmatpush.msra.mxu0 0.0
    %183 = vmatpush.msra.mxu0 0.0
    %184 = vmatpush.msra.mxu0 0.0
    %185 = vmatpush.msra.mxu0 0.0
    %186 = vmatpush.msra.mxu0 0.0
    %187 = vmatpush.msra.mxu0 0.0
    %188 = vmatpush.msra.mxu0 0.0
    %189 = vmatpush.msra.mxu0 0.0
    %190 = vmatpush.msra.mxu0 0.0
    %191 = vmatpush.msra.mxu0 0.0
    %192 = vmatpush.msra.mxu0 0.0
    %193 = vmatpush.msra.mxu0 0.0
    %194 = vmatpush.msra.mxu0 0.0
    %195 = vmatpush.msra.mxu0 %v50
    %196 = vmatmul.f32.gmra.mxu0 %v178
    %v197 = vpop.f32.mrf.mxu0
    %v198 = vadd.f32 0.0, %v197
    %199 = vdwg.mxu0
    %201 = vset.pattern.permute.xlu0 0
    %202 = vperm.xlu0 %201, %v171
    %v203 = vpop.permute.xlu0 %202
    %v204 = vperm.slane %v203, %v115
    %v205 = vsel %vm177, %v204, 0
    %207 = vmatpush.msra.mxu0 0.0
    %208 = vmatpush.msra.mxu0 0.0
    %209 = vmatpush.msra.mxu0 0.0
    %210 = vmatpush.msra.mxu0 0.0
    %211 = vmatpush.msra.mxu0 0.0
    %212 = vmatpush.msra.mxu0 0.0
    %213 = vmatpush.msra.mxu0 0.0
    %214 = vmatpush.msra.mxu0 0.0
    %215 = vmatpush.msra.mxu0 0.0
    %216 = vmatpush.msra.mxu0 0.0
    %217 = vmatpush.msra.mxu0 0.0
    %218 = vmatpush.msra.mxu0 0.0
    %219 = vmatpush.msra.mxu0 0.0
    %220 = vmatpush.msra.mxu0 0.0
    %221 = vmatpush.msra.mxu0 0.0
    %222 = vmatpush.msra.mxu0 %v51
    %223 = vmatmul.f32.gmra.mxu0 %v205
    %v224 = vpop.f32.mrf.mxu0
    %v225 = vadd.f32 0.0, %v224
    %226 = vdwg.mxu0
    %v229 = vrot.slane %v225, 7
    %v230 = vsel %vm118, %v229, %v198
    %vm232 = vcmask 254976
    %233 = vst.msk [vmem:[#allocation7] sm:$0x3] %vm232, %v230
    %v234 = vsel %vm118, %v204, %v176
    %236 = vst.msk [vmem:[#allocation8] sm:$0x3] %vm121, %v234
    // Predicated region
    $region22: #{tpu_custom_call.1} parent=1 // pred_check
      _
    $region23: #{tpu_custom_call.1} parent=1 // pred_check_branch
      %238 = sbr.rel (0) target = $region25
    $region24: #{tpu_custom_call.1} parent=1 // pred_region
      %240 = vsyncadd [#allocation4], 0
      %s242 = sshll.u32 [#allocation7], 4
      %s243 = int_to_ptr.vmem [resolvable:$true] %s242
      %s244 = sshll.u32 %s3, 4
      %s245 = int_to_ptr.hbm [resolvable:$true] %s244
      %247 = dma.vmem_to_hbm [thread:$0]  %s243, 32, %s245, [#allocation4]
    $region25: #{tpu_custom_call.1} parent=1 // pred_fallthru
      _
    // Predicated region
    $region26: #{tpu_custom_call.1} parent=1 // pred_check
      _
    $region27: #{tpu_custom_call.1} parent=1 // pred_check_branch
      %249 = sbr.rel (0) target = $region29
    $region28: #{tpu_custom_call.1} parent=1 // pred_region
      %251 = vsyncadd [#allocation9], 0
      %s253 = sshll.u32 [#allocation8], 4
      %s254 = int_to_ptr.vmem [resolvable:$true] %s253
      %s255 = sshll.u32 %s4, 4
      %s256 = int_to_ptr.hbm [resolvable:$true] %s255
      %258 = dma.vmem_to_hbm [thread:$0]  %s254, 32, %s256, [#allocation9]
    $region29: #{tpu_custom_call.1} parent=1 // pred_fallthru
      _
    // Predicated region
    $region30: #{tpu_custom_call.1} parent=1 // pred_check
      _
    $region31: #{tpu_custom_call.1} parent=1 // pred_check_branch
      %260 = sbr.rel (0) target = $region33
    $region32: #{tpu_custom_call.1} parent=1 // pred_region
      %262 = dma.done [#allocation4], 32
    $region33: #{tpu_custom_call.1} parent=1 // pred_fallthru
      _
    // Predicated region
    $region34: #{tpu_custom_call.1} parent=1 // pred_check
      _
    $region35: #{tpu_custom_call.1} parent=1 // pred_check_branch
      %264 = sbr.rel (0) target = $region37
    $region36: #{tpu_custom_call.1} parent=1 // pred_region
      %266 = dma.done [#allocation9], 32
    $region37: #{tpu_custom_call.1} parent=1 // pred_fallthru
      _
    %267 = vsyncpa [#allocation3], 1
    %268 = vsyncpa [#allocation6], 1
    %269 = vsyncpa [#allocation4], 1
    %270 = vsyncpa [#allocation9], 1

</llo_original>
